<compile_context>
chip_gen: v7x
topology: tpu7x:2x2x1
jax: 0.10.0
libtpu: 0.0.40
codegen_flags: <defaults>
</compile_context>

<pallas_src>
import functools

import jax
import jax.numpy as jnp
from jax.experimental import pallas as pl
from jax.experimental.pallas import tpu as pltpu

_HIGHEST = jax.lax.Precision.HIGHEST


def _round_up(x, m):
    return ((x + m - 1) // m) * m


def _lstm_recurrence_kernel(gx_ref, whh_ref, wl_ref, bl_ref, out_ref, h_ref, c_ref):
    """One (batch_block, time_chunk) grid step of the LSTM recurrence.

    gx_ref  : (Tc, Bb, 4H)  pre-scaled input projections for this chunk (VMEM)
    whh_ref : (H, 4H)       pre-scaled W_hh^T (VMEM)
    wl_ref  : (1, H)        output Linear weight row (VMEM)
    bl_ref  : (1,)          output Linear bias (SMEM scalar)
    out_ref : (Tc, Bb)      per-step scalar outputs for this chunk (VMEM)
    h_ref   : (Bb, H)       hidden state, persists across time chunks (VMEM scratch)
    c_ref   : (Bb, H)       cell state,  persists across time chunks (VMEM scratch)
    """
    Tc, Bb, G = gx_ref.shape
    H = whh_ref.shape[0]

    # New batch block -> reset recurrent state.
    @pl.when(pl.program_id(1) == 0)
    def _():
        h_ref[...] = jnp.zeros_like(h_ref)
        c_ref[...] = jnp.zeros_like(c_ref)

    whh = whh_ref[...]          # (H, 4H), i/f/o columns pre-scaled by 0.5
    wl = wl_ref[...]            # (1, H)
    bl = bl_ref[0]

    # Affine mapping tanh(pre-scaled gates) -> [sigmoid(i), sigmoid(f), tanh(g), sigmoid(o)]
    # (sigmoid(x) = 0.5 + 0.5*tanh(x/2); the /2 was folded into the weights, exactly).
    col = jax.lax.broadcasted_iota(jnp.int32, (1, G), 1)
    is_g = jnp.logical_and(col >= 2 * H, col < 3 * H)
    post_a = jnp.where(is_g, 1.0, 0.5).astype(jnp.float32)
    post_b = jnp.where(is_g, 0.0, 0.5).astype(jnp.float32)

    def step(t, carry):
        h, c = carry
        # Recurrent matmul on the MXU (default precision: bf16 passes, f32 accumulation).
        gates = gx_ref[t] + jnp.dot(h, whh, preferred_element_type=jnp.float32)
        act = jnp.tanh(gates) * post_a + post_b          # ONE full-width EUP tanh
        i_g = act[:, 0 * H:1 * H]
        f_g = act[:, 1 * H:2 * H]
        g_g = act[:, 2 * H:3 * H]
        o_g = act[:, 3 * H:4 * H]
        c_new = f_g * c + i_g * g_g
        h_new = o_g * jnp.tanh(c_new)                    # second (and last) EUP op per step
        # hidden->1 Linear folded into the step: VPU multiply + lane reduce, one row store.
        out_ref[t, :] = jnp.sum(h_new * wl, axis=-1) + bl
        return (h_new, c_new)

    h, c = jax.lax.fori_loop(0, Tc, step, (h_ref[...], c_ref[...]),
                             unroll=min(Tc, 8))
    h_ref[...] = h
    c_ref[...] = c


@jax.jit
def simple_lstm_forward(x_btf, params):
    """x_btf: (B, T, F) float32 (batch_first, like the PyTorch module). Returns (B, T, 1)."""
    B, T, F = x_btf.shape
    wih, whh, bih, bhh, wl, bl = (params["wih"], params["whh"], params["bih"],
                                  params["bhh"], params["wl"], params["bl"])
    H = whh.shape[1]
    G = 4 * H

    # Exact power-of-two pre-scale: 0.5 on i/f/o gate columns, 1.0 on g.
    s = jnp.concatenate([jnp.full((H,), 0.5, jnp.float32),
                         jnp.full((H,), 0.5, jnp.float32),
                         jnp.ones((H,), jnp.float32),
                         jnp.full((H,), 0.5, jnp.float32)])

    wih_s = wih.T * s[None, :]                  # (F, 4H)
    whh_s = whh.T * s[None, :]                  # (H, 4H)
    b_s = ((bih + bhh) * s)[None, None, :]      # (1, 1, 4H)
    wl_row = wl.reshape(1, H)                   # (1, H)
    bl1 = bl.reshape(1)                         # (1,)

    # ---- Batch padding & blocking (rows -> MXU M / VPU sublanes) --------------------------
    if B <= 256:
        Bp = _round_up(B, 8)
        Bb = Bp
    else:
        Bp = _round_up(B, 256)
        Bb = 256
    nb = Bp // Bb

    # ---- Time chunking: stream gx in <= ~2 MiB blocks so VMEM is independent of T --------
    bytes_per_step = Bb * G * 4
    tc_cap = max(8, ((2 << 20) // bytes_per_step) // 8 * 8)
    Tc = min(_round_up(T, 8), tc_cap)
    Tp = _round_up(T, Tc)
    nt = Tp // Tc

    # ---- Input projection as a plain XLA GEMM (K = F is tiny / lane-sparse) ---------------
    gx = jnp.dot(x_btf, wih_s) + b_s                         # (B, T, 4H)
    gx = jnp.transpose(gx, (1, 0, 2))                        # time-major (T, B, 4H)
    gx = jnp.pad(gx, ((0, Tp - T), (0, Bp - B), (0, 0)))     # (Tp, Bp, 4H)

    # ---- VMEM budget: double-buffered gx/out blocks + weights + persistent state ----------
    gx_block = Tc * Bb * G * 4
    out_block = Tc * max(Bb, 128) * 4
    weights = (H * G + H) * 4
    state = 2 * Bb * max(H, 128) * 4
    vmem_limit = int(min(max(2 * (gx_block + out_block) + 2 * weights + state + (4 << 20),
                             8 << 20), 56 << 20))

    out_tb = pl.pallas_call(
        _lstm_recurrence_kernel,
        out_shape=jax.ShapeDtypeStruct((Tp, Bp), jnp.float32),
        grid=(nb, nt),
        in_specs=[
            pl.BlockSpec((Tc, Bb, G), lambda b, t: (t, b, 0)),        # gx time-chunk
            pl.BlockSpec((H, G), lambda b, t: (0, 0)),                # W_hh^T (pre-scaled)
            pl.BlockSpec((1, H), lambda b, t: (0, 0)),                # W_linear row
            pl.BlockSpec(memory_space=pltpu.MemorySpace.SMEM),        # linear bias scalar
        ],
        out_specs=pl.BlockSpec((Tc, Bb), lambda b, t: (t, b)),
        scratch_shapes=[
            pltpu.VMEM((Bb, H), jnp.float32),    # h state (persists across time chunks)
            pltpu.VMEM((Bb, H), jnp.float32),    # c state
        ],
        compiler_params=pltpu.CompilerParams(
            dimension_semantics=("parallel", "arbitrary"),
            vmem_limit_bytes=vmem_limit,
        ),
    )(gx, whh_s, wl_row, bl1)

    out = jnp.transpose(out_tb[:T, :B])[..., None]           # (B, T, 1)
    return out


def _reference_forward(x_btf, params):
    """Pure-JAX reference implementing PyTorch nn.LSTM + nn.Linear semantics (full f32)."""
    wih, whh, bih, bhh, wl, bl = (params["wih"], params["whh"], params["bih"],
                                  params["bhh"], params["wl"], params["bl"])
    B, T, F = x_btf.shape
    H = whh.shape[1]

    dot = functools.partial(jnp.dot, precision=_HIGHEST)

    def step(carry, x_t):
        h, c = carry
        gates = dot(x_t, wih.T) + bih + dot(h, whh.T) + bhh
        i = jax.nn.sigmoid(gates[:, 0 * H:1 * H])
        f = jax.nn.sigmoid(gates[:, 1 * H:2 * H])
        g = jnp.tanh(gates[:, 2 * H:3 * H])
        o = jax.nn.sigmoid(gates[:, 3 * H:4 * H])
        c = f * c + i * g
        h = o * jnp.tanh(c)
        return (h, c), h

    h0 = jnp.zeros((B, H), jnp.float32)
    c0 = jnp.zeros((B, H), jnp.float32)
    _, hs = jax.lax.scan(step, (h0, c0), jnp.transpose(x_btf, (1, 0, 2)))
    hs = jnp.transpose(hs, (1, 0, 2))              # (B, T, H)
    return dot(hs, wl.T) + bl                      # (B, T, 1)


def init_params(key, num_features, hidden_units):
    """Deterministic init mimicking PyTorch's U(-1/sqrt(H), 1/sqrt(H))."""
    H, F = hidden_units, num_features
    k = 1.0 / jnp.sqrt(jnp.float32(H))
    keys = jax.random.split(key, 6)
    u = lambda kk, shape: jax.random.uniform(kk, shape, jnp.float32, -k, k)
    return {
        "wih": u(keys[0], (4 * H, F)),
        "whh": u(keys[1], (4 * H, H)),
        "bih": u(keys[2], (4 * H,)),
        "bhh": u(keys[3], (4 * H,)),
        "wl":  u(keys[4], (1, H)),
        "bl":  u(keys[5], (1,)),
    }


if __name__ == "__main__":
    B, T, F, H = 2, 8, 4, 32

    key = jax.random.PRNGKey(0)
    kx, kp = jax.random.split(key)
    x = jax.random.normal(kx, (B, T, F), jnp.float32)
    params = init_params(kp, num_features=F, hidden_units=H)

    out = simple_lstm_forward(x, params)
    out = jax.block_until_ready(out)

    ref = _reference_forward(x, params)
    assert out.shape == (B, T, 1), out.shape
    # Kernel uses default (bf16-pass) MXU precision on the recurrent matmul per the perf review;
    # typical deviation vs the full-f32 reference is ~1e-3, bound well within 2e-2.
    assert jnp.allclose(out, ref, atol=2e-2, rtol=2e-2), \
        f"max abs err {jnp.max(jnp.abs(out - ref))}"

    print("KERNEL_OK")
</pallas_src>

<mosaic_0001>
module attributes {stable_mosaic.version = 11 : i64} {
  func.func @_lstm_recurrence_kernel(%arg0: i32, %arg1: i32, %arg2: memref<8x8x128xf32, #tpu.memory_space<vmem>>, %arg3: memref<32x128xf32, #tpu.memory_space<vmem>>, %arg4: memref<1x32xf32, #tpu.memory_space<vmem>>, %arg5: memref<1xf32, #tpu.memory_space<smem>>, %arg6: memref<8x8xf32, #tpu.memory_space<vmem>>, %arg7: memref<8x32xf32, #tpu.memory_space<vmem>>, %arg8: memref<8x32xf32, #tpu.memory_space<vmem>>) attributes {dimension_semantics = [#tpu.dimension_semantics<parallel>, #tpu.dimension_semantics<arbitrary>], iteration_bounds = array<i64: 1, 1>, scalar_prefetch = 0 : i64, scratch_operands = 2 : i64, tpu.core_type = #tpu.core_type<tc>, window_params = [{transform_indices = @transform_0, window_bounds = array<i64: 8, 8, 128>}, {pipeline_mode = #tpu.pipeline_mode<synchronous>, transform_indices = @transform_1, window_bounds = array<i64: 32, 128>}, {pipeline_mode = #tpu.pipeline_mode<synchronous>, transform_indices = @transform_2, window_bounds = array<i64: 1, 32>}, {transform_indices = @transform_3, window_bounds = array<i64: 1>}, {transform_indices = @transform_4, window_bounds = array<i64: 8, 8>}]} {
    %c0_i32 = arith.constant 0 : i32
    %0 = arith.cmpi eq, %arg1, %c0_i32 : i32
    %1 = arith.extui %0 : i1 to i32
    %c0_i32_0 = arith.constant 0 : i32
    %2 = arith.cmpi ne, %1, %c0_i32_0 : i32
    scf.if %2 {
      %cst_57 = arith.constant 0.000000e+00 : f32
      %246 = vector.broadcast %cst_57 : f32 to vector<8x32xf32>
      %c0_58 = arith.constant 0 : index
      %c0_59 = arith.constant 0 : index
      %247 = vector.load %arg7[%c0_58, %c0_59] : memref<8x32xf32, #tpu.memory_space<vmem>>, vector<8x32xf32>
      tpu.vector_store %arg7[%c0_58, %c0_59], %246 {strides = array<i32>} : memref<8x32xf32, #tpu.memory_space<vmem>>, vector<8x32xf32>,
      %cst_60 = arith.constant 0.000000e+00 : f32
      %248 = vector.broadcast %cst_60 : f32 to vector<8x32xf32>
      %c0_61 = arith.constant 0 : index
      %c0_62 = arith.constant 0 : index
      %249 = vector.load %arg8[%c0_61, %c0_62] : memref<8x32xf32, #tpu.memory_space<vmem>>, vector<8x32xf32>
      tpu.vector_store %arg8[%c0_61, %c0_62], %248 {strides = array<i32>} : memref<8x32xf32, #tpu.memory_space<vmem>>, vector<8x32xf32>,
    } else {
    }
    %c0 = arith.constant 0 : index
    %c0_1 = arith.constant 0 : index
    %3 = vector.load %arg3[%c0, %c0_1] : memref<32x128xf32, #tpu.memory_space<vmem>>, vector<32x128xf32>
    %c0_2 = arith.constant 0 : index
    %c0_3 = arith.constant 0 : index
    %4 = vector.load %arg4[%c0_2, %c0_3] : memref<1x32xf32, #tpu.memory_space<vmem>>, vector<1x32xf32>
    %c0_4 = arith.constant 0 : index
    %5 = memref.load %arg5[%c0_4] : memref<1xf32, #tpu.memory_space<smem>>
    %6 = tpu.iota {dimensions = array<i32: 1>} : vector<1x128xi32>
    %c64_i32 = arith.constant 64 : i32
    %7 = vector.broadcast %c64_i32 : i32 to vector<1x128xi32>
    %8 = arith.cmpi sge, %6, %7 : vector<1x128xi32>
    %c96_i32 = arith.constant 96 : i32
    %9 = vector.broadcast %c96_i32 : i32 to vector<1x128xi32>
    %10 = arith.cmpi slt, %6, %9 : vector<1x128xi32>
    %11 = arith.andi %8, %10 : vector<1x128xi1>
    %cst = arith.constant 1.000000e+00 : f32
    %cst_5 = arith.constant 5.000000e-01 : f32
    %12 = vector.broadcast %cst : f32 to vector<1x128xf32>
    %13 = vector.broadcast %cst_5 : f32 to vector<1x128xf32>
    %14 = arith.select %11, %12, %13 : vector<1x128xi1>, vector<1x128xf32>
    %cst_6 = arith.constant 0.000000e+00 : f32
    %cst_7 = arith.constant 5.000000e-01 : f32
    %15 = vector.broadcast %cst_6 : f32 to vector<1x128xf32>
    %16 = vector.broadcast %cst_7 : f32 to vector<1x128xf32>
    %17 = arith.select %11, %15, %16 : vector<1x128xi1>, vector<1x128xf32>
    %c0_8 = arith.constant 0 : index
    %c0_9 = arith.constant 0 : index
    %18 = vector.load %arg7[%c0_8, %c0_9] : memref<8x32xf32, #tpu.memory_space<vmem>>, vector<8x32xf32>
    %c0_10 = arith.constant 0 : index
    %c0_11 = arith.constant 0 : index
    %19 = vector.load %arg8[%c0_10, %c0_11] : memref<8x32xf32, #tpu.memory_space<vmem>>, vector<8x32xf32>
    %c0_i32_12 = arith.constant 0 : i32
    %20 = arith.index_cast %c0_i32_12 : i32 to index
    %c0_13 = arith.constant 0 : index
    %c0_14 = arith.constant 0 : index
    %21 = vector.load %arg2[%20, %c0_13, %c0_14] : memref<8x8x128xf32, #tpu.memory_space<vmem>>, vector<1x8x128xf32>
    %22 = vector.shape_cast %21 : vector<1x8x128xf32> to vector<8x128xf32>
    %cst_15 = arith.constant dense<0.000000e+00> : vector<8x128xf32>
    %23 = tpu.matmul %18, %3, %cst_15 {dimension_numbers = #tpu.dot_dimension_numbers<[1], [0], [0], [1], [0, 0, 1, 1], [], []>} : vector<8x32xf32>, vector<32x128xf32>, vector<8x128xf32> -> vector<8x128xf32>
    %24 = arith.addf %22, %23 : vector<8x128xf32>
    %25 = math.tanh %24 : vector<8x128xf32>
    %26 = vector.broadcast %14 : vector<1x128xf32> to vector<8x128xf32>
    %27 = arith.mulf %25, %26 : vector<8x128xf32>
    %28 = vector.broadcast %17 : vector<1x128xf32> to vector<8x128xf32>
    %29 = arith.addf %27, %28 : vector<8x128xf32>
    %30 = vector.extract_strided_slice %29 {offsets = [0, 0], sizes = [8, 32], strides = [1, 1]} : vector<8x128xf32> to vector<8x32xf32>
    %31 = vector.extract_strided_slice %29 {offsets = [0, 32], sizes = [8, 32], strides = [1, 1]} : vector<8x128xf32> to vector<8x32xf32>
    %32 = vector.extract_strided_slice %29 {offsets = [0, 64], sizes = [8, 32], strides = [1, 1]} : vector<8x128xf32> to vector<8x32xf32>
    %33 = vector.extract_strided_slice %29 {offsets = [0, 96], sizes = [8, 32], strides = [1, 1]} : vector<8x128xf32> to vector<8x32xf32>
    %34 = arith.mulf %31, %19 : vector<8x32xf32>
    %35 = arith.mulf %30, %32 : vector<8x32xf32>
    %36 = arith.addf %34, %35 : vector<8x32xf32>
    %37 = math.tanh %36 : vector<8x32xf32>
    %38 = arith.mulf %33, %37 : vector<8x32xf32>
    %39 = vector.broadcast %4 : vector<1x32xf32> to vector<8x32xf32>
    %40 = arith.mulf %38, %39 : vector<8x32xf32>
    %cst_16 = arith.constant dense<0.000000e+00> : vector<8xf32>
    %41 = vector.multi_reduction <add>, %40, %cst_16 [1] : vector<8x32xf32> to vector<8xf32>
    %42 = vector.broadcast %5 : f32 to vector<8xf32>
    %43 = arith.addf %41, %42 : vector<8xf32>
    %44 = arith.index_cast %c0_i32_12 : i32 to index
    %c0_17 = arith.constant 0 : index
    %45 = vector.load %arg6[%44, %c0_17] : memref<8x8xf32, #tpu.memory_space<vmem>>, vector<1x8xf32>
    %46 = vector.shape_cast %45 : vector<1x8xf32> to vector<8xf32>
    %47 = vector.shape_cast %43 : vector<8xf32> to vector<1x8xf32>
    tpu.vector_store %arg6[%44, %c0_17], %47 {strides = array<i32>} : memref<8x8xf32, #tpu.memory_space<vmem>>, vector<1x8xf32>,
    %c1_i32 = arith.constant 1 : i32
    %48 = arith.index_cast %c1_i32 : i32 to index
    %c0_18 = arith.constant 0 : index
    %c0_19 = arith.constant 0 : index
    %49 = vector.load %arg2[%48, %c0_18, %c0_19] : memref<8x8x128xf32, #tpu.memory_space<vmem>>, vector<1x8x128xf32>
    %50 = vector.shape_cast %49 : vector<1x8x128xf32> to vector<8x128xf32>
    %cst_20 = arith.constant dense<0.000000e+00> : vector<8x128xf32>
    %51 = tpu.matmul %38, %3, %cst_20 {dimension_numbers = #tpu.dot_dimension_numbers<[1], [0], [0], [1], [0, 0, 1, 1], [], []>} : vector<8x32xf32>, vector<32x128xf32>, vector<8x128xf32> -> vector<8x128xf32>
    %52 = arith.addf %50, %51 : vector<8x128xf32>
    %53 = math.tanh %52 : vector<8x128xf32>
    %54 = vector.broadcast %14 : vector<1x128xf32> to vector<8x128xf32>
    %55 = arith.mulf %53, %54 : vector<8x128xf32>
    %56 = vector.broadcast %17 : vector<1x128xf32> to vector<8x128xf32>
    %57 = arith.addf %55, %56 : vector<8x128xf32>
    %58 = vector.extract_strided_slice %57 {offsets = [0, 0], sizes = [8, 32], strides = [1, 1]} : vector<8x128xf32> to vector<8x32xf32>
    %59 = vector.extract_strided_slice %57 {offsets = [0, 32], sizes = [8, 32], strides = [1, 1]} : vector<8x128xf32> to vector<8x32xf32>
    %60 = vector.extract_strided_slice %57 {offsets = [0, 64], sizes = [8, 32], strides = [1, 1]} : vector<8x128xf32> to vector<8x32xf32>
    %61 = vector.extract_strided_slice %57 {offsets = [0, 96], sizes = [8, 32], strides = [1, 1]} : vector<8x128xf32> to vector<8x32xf32>
    %62 = arith.mulf %59, %36 : vector<8x32xf32>
    %63 = arith.mulf %58, %60 : vector<8x32xf32>
    %64 = arith.addf %62, %63 : vector<8x32xf32>
    %65 = math.tanh %64 : vector<8x32xf32>
    %66 = arith.mulf %61, %65 : vector<8x32xf32>
    %67 = vector.broadcast %4 : vector<1x32xf32> to vector<8x32xf32>
    %68 = arith.mulf %66, %67 : vector<8x32xf32>
    %cst_21 = arith.constant dense<0.000000e+00> : vector<8xf32>
    %69 = vector.multi_reduction <add>, %68, %cst_21 [1] : vector<8x32xf32> to vector<8xf32>
    %70 = vector.broadcast %5 : f32 to vector<8xf32>
    %71 = arith.addf %69, %70 : vector<8xf32>
    %72 = arith.index_cast %c1_i32 : i32 to index
    %c0_22 = arith.constant 0 : index
    %73 = vector.load %arg6[%72, %c0_22] : memref<8x8xf32, #tpu.memory_space<vmem>>, vector<1x8xf32>
    %74 = vector.shape_cast %73 : vector<1x8xf32> to vector<8xf32>
    %75 = vector.shape_cast %71 : vector<8xf32> to vector<1x8xf32>
    tpu.vector_store %arg6[%72, %c0_22], %75 {strides = array<i32>} : memref<8x8xf32, #tpu.memory_space<vmem>>, vector<1x8xf32>,
    %c2_i32 = arith.constant 2 : i32
    %76 = arith.index_cast %c2_i32 : i32 to index
    %c0_23 = arith.constant 0 : index
    %c0_24 = arith.constant 0 : index
    %77 = vector.load %arg2[%76, %c0_23, %c0_24] : memref<8x8x128xf32, #tpu.memory_space<vmem>>, vector<1x8x128xf32>
    %78 = vector.shape_cast %77 : vector<1x8x128xf32> to vector<8x128xf32>
    %cst_25 = arith.constant dense<0.000000e+00> : vector<8x128xf32>
    %79 = tpu.matmul %66, %3, %cst_25 {dimension_numbers = #tpu.dot_dimension_numbers<[1], [0], [0], [1], [0, 0, 1, 1], [], []>} : vector<8x32xf32>, vector<32x128xf32>, vector<8x128xf32> -> vector<8x128xf32>
    %80 = arith.addf %78, %79 : vector<8x128xf32>
    %81 = math.tanh %80 : vector<8x128xf32>
    %82 = vector.broadcast %14 : vector<1x128xf32> to vector<8x128xf32>
    %83 = arith.mulf %81, %82 : vector<8x128xf32>
    %84 = vector.broadcast %17 : vector<1x128xf32> to vector<8x128xf32>
    %85 = arith.addf %83, %84 : vector<8x128xf32>
    %86 = vector.extract_strided_slice %85 {offsets = [0, 0], sizes = [8, 32], strides = [1, 1]} : vector<8x128xf32> to vector<8x32xf32>
    %87 = vector.extract_strided_slice %85 {offsets = [0, 32], sizes = [8, 32], strides = [1, 1]} : vector<8x128xf32> to vector<8x32xf32>
    %88 = vector.extract_strided_slice %85 {offsets = [0, 64], sizes = [8, 32], strides = [1, 1]} : vector<8x128xf32> to vector<8x32xf32>
    %89 = vector.extract_strided_slice %85 {offsets = [0, 96], sizes = [8, 32], strides = [1, 1]} : vector<8x128xf32> to vector<8x32xf32>
    %90 = arith.mulf %87, %64 : vector<8x32xf32>
    %91 = arith.mulf %86, %88 : vector<8x32xf32>
    %92 = arith.addf %90, %91 : vector<8x32xf32>
    %93 = math.tanh %92 : vector<8x32xf32>
    %94 = arith.mulf %89, %93 : vector<8x32xf32>
    %95 = vector.broadcast %4 : vector<1x32xf32> to vector<8x32xf32>
    %96 = arith.mulf %94, %95 : vector<8x32xf32>
    %cst_26 = arith.constant dense<0.000000e+00> : vector<8xf32>
    %97 = vector.multi_reduction <add>, %96, %cst_26 [1] : vector<8x32xf32> to vector<8xf32>
    %98 = vector.broadcast %5 : f32 to vector<8xf32>
    %99 = arith.addf %97, %98 : vector<8xf32>
    %100 = arith.index_cast %c2_i32 : i32 to index
    %c0_27 = arith.constant 0 : index
    %101 = vector.load %arg6[%100, %c0_27] : memref<8x8xf32, #tpu.memory_space<vmem>>, vector<1x8xf32>
    %102 = vector.shape_cast %101 : vector<1x8xf32> to vector<8xf32>
    %103 = vector.shape_cast %99 : vector<8xf32> to vector<1x8xf32>
    tpu.vector_store %arg6[%100, %c0_27], %103 {strides = array<i32>} : memref<8x8xf32, #tpu.memory_space<vmem>>, vector<1x8xf32>,
    %c3_i32 = arith.constant 3 : i32
    %104 = arith.index_cast %c3_i32 : i32 to index
    %c0_28 = arith.constant 0 : index
    %c0_29 = arith.constant 0 : index
    %105 = vector.load %arg2[%104, %c0_28, %c0_29] : memref<8x8x128xf32, #tpu.memory_space<vmem>>, vector<1x8x128xf32>
    %106 = vector.shape_cast %105 : vector<1x8x128xf32> to vector<8x128xf32>
    %cst_30 = arith.constant dense<0.000000e+00> : vector<8x128xf32>
    %107 = tpu.matmul %94, %3, %cst_30 {dimension_numbers = #tpu.dot_dimension_numbers<[1], [0], [0], [1], [0, 0, 1, 1], [], []>} : vector<8x32xf32>, vector<32x128xf32>, vector<8x128xf32> -> vector<8x128xf32>
    %108 = arith.addf %106, %107 : vector<8x128xf32>
    %109 = math.tanh %108 : vector<8x128xf32>
    %110 = vector.broadcast %14 : vector<1x128xf32> to vector<8x128xf32>
    %111 = arith.mulf %109, %110 : vector<8x128xf32>
    %112 = vector.broadcast %17 : vector<1x128xf32> to vector<8x128xf32>
    %113 = arith.addf %111, %112 : vector<8x128xf32>
    %114 = vector.extract_strided_slice %113 {offsets = [0, 0], sizes = [8, 32], strides = [1, 1]} : vector<8x128xf32> to vector<8x32xf32>
    %115 = vector.extract_strided_slice %113 {offsets = [0, 32], sizes = [8, 32], strides = [1, 1]} : vector<8x128xf32> to vector<8x32xf32>
    %116 = vector.extract_strided_slice %113 {offsets = [0, 64], sizes = [8, 32], strides = [1, 1]} : vector<8x128xf32> to vector<8x32xf32>
    %117 = vector.extract_strided_slice %113 {offsets = [0, 96], sizes = [8, 32], strides = [1, 1]} : vector<8x128xf32> to vector<8x32xf32>
    %118 = arith.mulf %115, %92 : vector<8x32xf32>
    %119 = arith.mulf %114, %116 : vector<8x32xf32>
    %120 = arith.addf %118, %119 : vector<8x32xf32>
    %121 = math.tanh %120 : vector<8x32xf32>
    %122 = arith.mulf %117, %121 : vector<8x32xf32>
    %123 = vector.broadcast %4 : vector<1x32xf32> to vector<8x32xf32>
    %124 = arith.mulf %122, %123 : vector<8x32xf32>
    %cst_31 = arith.constant dense<0.000000e+00> : vector<8xf32>
    %125 = vector.multi_reduction <add>, %124, %cst_31 [1] : vector<8x32xf32> to vector<8xf32>
    %126 = vector.broadcast %5 : f32 to vector<8xf32>
    %127 = arith.addf %125, %126 : vector<8xf32>
    %128 = arith.index_cast %c3_i32 : i32 to index
    %c0_32 = arith.constant 0 : index
    %129 = vector.load %arg6[%128, %c0_32] : memref<8x8xf32, #tpu.memory_space<vmem>>, vector<1x8xf32>
    %130 = vector.shape_cast %129 : vector<1x8xf32> to vector<8xf32>
    %131 = vector.shape_cast %127 : vector<8xf32> to vector<1x8xf32>
    tpu.vector_store %arg6[%128, %c0_32], %131 {strides = array<i32>} : memref<8x8xf32, #tpu.memory_space<vmem>>, vector<1x8xf32>,
    %c4_i32 = arith.constant 4 : i32
    %132 = arith.index_cast %c4_i32 : i32 to index
    %c0_33 = arith.constant 0 : index
    %c0_34 = arith.constant 0 : index
    %133 = vector.load %arg2[%132, %c0_33, %c0_34] : memref<8x8x128xf32, #tpu.memory_space<vmem>>, vector<1x8x128xf32>
    %134 = vector.shape_cast %133 : vector<1x8x128xf32> to vector<8x128xf32>
    %cst_35 = arith.constant dense<0.000000e+00> : vector<8x128xf32>
    %135 = tpu.matmul %122, %3, %cst_35 {dimension_numbers = #tpu.dot_dimension_numbers<[1], [0], [0], [1], [0, 0, 1, 1], [], []>} : vector<8x32xf32>, vector<32x128xf32>, vector<8x128xf32> -> vector<8x128xf32>
    %136 = arith.addf %134, %135 : vector<8x128xf32>
    %137 = math.tanh %136 : vector<8x128xf32>
    %138 = vector.broadcast %14 : vector<1x128xf32> to vector<8x128xf32>
    %139 = arith.mulf %137, %138 : vector<8x128xf32>
    %140 = vector.broadcast %17 : vector<1x128xf32> to vector<8x128xf32>
    %141 = arith.addf %139, %140 : vector<8x128xf32>
    %142 = vector.extract_strided_slice %141 {offsets = [0, 0], sizes = [8, 32], strides = [1, 1]} : vector<8x128xf32> to vector<8x32xf32>
    %143 = vector.extract_strided_slice %141 {offsets = [0, 32], sizes = [8, 32], strides = [1, 1]} : vector<8x128xf32> to vector<8x32xf32>
    %144 = vector.extract_strided_slice %141 {offsets = [0, 64], sizes = [8, 32], strides = [1, 1]} : vector<8x128xf32> to vector<8x32xf32>
    %145 = vector.extract_strided_slice %141 {offsets = [0, 96], sizes = [8, 32], strides = [1, 1]} : vector<8x128xf32> to vector<8x32xf32>
    %146 = arith.mulf %143, %120 : vector<8x32xf32>
    %147 = arith.mulf %142, %144 : vector<8x32xf32>
    %148 = arith.addf %146, %147 : vector<8x32xf32>
    %149 = math.tanh %148 : vector<8x32xf32>
    %150 = arith.mulf %145, %149 : vector<8x32xf32>
    %151 = vector.broadcast %4 : vector<1x32xf32> to vector<8x32xf32>
    %152 = arith.mulf %150, %151 : vector<8x32xf32>
    %cst_36 = arith.constant dense<0.000000e+00> : vector<8xf32>
    %153 = vector.multi_reduction <add>, %152, %cst_36 [1] : vector<8x32xf32> to vector<8xf32>
    %154 = vector.broadcast %5 : f32 to vector<8xf32>
    %155 = arith.addf %153, %154 : vector<8xf32>
    %156 = arith.index_cast %c4_i32 : i32 to index
    %c0_37 = arith.constant 0 : index
    %157 = vector.load %arg6[%156, %c0_37] : memref<8x8xf32, #tpu.memory_space<vmem>>, vector<1x8xf32>
    %158 = vector.shape_cast %157 : vector<1x8xf32> to vector<8xf32>
    %159 = vector.shape_cast %155 : vector<8xf32> to vector<1x8xf32>
    tpu.vector_store %arg6[%156, %c0_37], %159 {strides = array<i32>} : memref<8x8xf32, #tpu.memory_space<vmem>>, vector<1x8xf32>,
    %c5_i32 = arith.constant 5 : i32
    %160 = arith.index_cast %c5_i32 : i32 to index
    %c0_38 = arith.constant 0 : index
    %c0_39 = arith.constant 0 : index
    %161 = vector.load %arg2[%160, %c0_38, %c0_39] : memref<8x8x128xf32, #tpu.memory_space<vmem>>, vector<1x8x128xf32>
    %162 = vector.shape_cast %161 : vector<1x8x128xf32> to vector<8x128xf32>
    %cst_40 = arith.constant dense<0.000000e+00> : vector<8x128xf32>
    %163 = tpu.matmul %150, %3, %cst_40 {dimension_numbers = #tpu.dot_dimension_numbers<[1], [0], [0], [1], [0, 0, 1, 1], [], []>} : vector<8x32xf32>, vector<32x128xf32>, vector<8x128xf32> -> vector<8x128xf32>
    %164 = arith.addf %162, %163 : vector<8x128xf32>
    %165 = math.tanh %164 : vector<8x128xf32>
    %166 = vector.broadcast %14 : vector<1x128xf32> to vector<8x128xf32>
    %167 = arith.mulf %165, %166 : vector<8x128xf32>
    %168 = vector.broadcast %17 : vector<1x128xf32> to vector<8x128xf32>
    %169 = arith.addf %167, %168 : vector<8x128xf32>
    %170 = vector.extract_strided_slice %169 {offsets = [0, 0], sizes = [8, 32], strides = [1, 1]} : vector<8x128xf32> to vector<8x32xf32>
    %171 = vector.extract_strided_slice %169 {offsets = [0, 32], sizes = [8, 32], strides = [1, 1]} : vector<8x128xf32> to vector<8x32xf32>
    %172 = vector.extract_strided_slice %169 {offsets = [0, 64], sizes = [8, 32], strides = [1, 1]} : vector<8x128xf32> to vector<8x32xf32>
    %173 = vector.extract_strided_slice %169 {offsets = [0, 96], sizes = [8, 32], strides = [1, 1]} : vector<8x128xf32> to vector<8x32xf32>
    %174 = arith.mulf %171, %148 : vector<8x32xf32>
    %175 = arith.mulf %170, %172 : vector<8x32xf32>
    %176 = arith.addf %174, %175 : vector<8x32xf32>
    %177 = math.tanh %176 : vector<8x32xf32>
    %178 = arith.mulf %173, %177 : vector<8x32xf32>
    %179 = vector.broadcast %4 : vector<1x32xf32> to vector<8x32xf32>
    %180 = arith.mulf %178, %179 : vector<8x32xf32>
    %cst_41 = arith.constant dense<0.000000e+00> : vector<8xf32>
    %181 = vector.multi_reduction <add>, %180, %cst_41 [1] : vector<8x32xf32> to vector<8xf32>
    %182 = vector.broadcast %5 : f32 to vector<8xf32>
    %183 = arith.addf %181, %182 : vector<8xf32>
    %184 = arith.index_cast %c5_i32 : i32 to index
    %c0_42 = arith.constant 0 : index
    %185 = vector.load %arg6[%184, %c0_42] : memref<8x8xf32, #tpu.memory_space<vmem>>, vector<1x8xf32>
    %186 = vector.shape_cast %185 : vector<1x8xf32> to vector<8xf32>
    %187 = vector.shape_cast %183 : vector<8xf32> to vector<1x8xf32>
    tpu.vector_store %arg6[%184, %c0_42], %187 {strides = array<i32>} : memref<8x8xf32, #tpu.memory_space<vmem>>, vector<1x8xf32>,
    %c6_i32 = arith.constant 6 : i32
    %188 = arith.index_cast %c6_i32 : i32 to index
    %c0_43 = arith.constant 0 : index
    %c0_44 = arith.constant 0 : index
    %189 = vector.load %arg2[%188, %c0_43, %c0_44] : memref<8x8x128xf32, #tpu.memory_space<vmem>>, vector<1x8x128xf32>
    %190 = vector.shape_cast %189 : vector<1x8x128xf32> to vector<8x128xf32>
    %cst_45 = arith.constant dense<0.000000e+00> : vector<8x128xf32>
    %191 = tpu.matmul %178, %3, %cst_45 {dimension_numbers = #tpu.dot_dimension_numbers<[1], [0], [0], [1], [0, 0, 1, 1], [], []>} : vector<8x32xf32>, vector<32x128xf32>, vector<8x128xf32> -> vector<8x128xf32>
    %192 = arith.addf %190, %191 : vector<8x128xf32>
    %193 = math.tanh %192 : vector<8x128xf32>
    %194 = vector.broadcast %14 : vector<1x128xf32> to vector<8x128xf32>
    %195 = arith.mulf %193, %194 : vector<8x128xf32>
    %196 = vector.broadcast %17 : vector<1x128xf32> to vector<8x128xf32>
    %197 = arith.addf %195, %196 : vector<8x128xf32>
    %198 = vector.extract_strided_slice %197 {offsets = [0, 0], sizes = [8, 32], strides = [1, 1]} : vector<8x128xf32> to vector<8x32xf32>
    %199 = vector.extract_strided_slice %197 {offsets = [0, 32], sizes = [8, 32], strides = [1, 1]} : vector<8x128xf32> to vector<8x32xf32>
    %200 = vector.extract_strided_slice %197 {offsets = [0, 64], sizes = [8, 32], strides = [1, 1]} : vector<8x128xf32> to vector<8x32xf32>
    %201 = vector.extract_strided_slice %197 {offsets = [0, 96], sizes = [8, 32], strides = [1, 1]} : vector<8x128xf32> to vector<8x32xf32>
    %202 = arith.mulf %199, %176 : vector<8x32xf32>
    %203 = arith.mulf %198, %200 : vector<8x32xf32>
    %204 = arith.addf %202, %203 : vector<8x32xf32>
    %205 = math.tanh %204 : vector<8x32xf32>
    %206 = arith.mulf %201, %205 : vector<8x32xf32>
    %207 = vector.broadcast %4 : vector<1x32xf32> to vector<8x32xf32>
    %208 = arith.mulf %206, %207 : vector<8x32xf32>
    %cst_46 = arith.constant dense<0.000000e+00> : vector<8xf32>
    %209 = vector.multi_reduction <add>, %208, %cst_46 [1] : vector<8x32xf32> to vector<8xf32>
    %210 = vector.broadcast %5 : f32 to vector<8xf32>
    %211 = arith.addf %209, %210 : vector<8xf32>
    %212 = arith.index_cast %c6_i32 : i32 to index
    %c0_47 = arith.constant 0 : index
    %213 = vector.load %arg6[%212, %c0_47] : memref<8x8xf32, #tpu.memory_space<vmem>>, vector<1x8xf32>
    %214 = vector.shape_cast %213 : vector<1x8xf32> to vector<8xf32>
    %215 = vector.shape_cast %211 : vector<8xf32> to vector<1x8xf32>
    tpu.vector_store %arg6[%212, %c0_47], %215 {strides = array<i32>} : memref<8x8xf32, #tpu.memory_space<vmem>>, vector<1x8xf32>,
    %c7_i32 = arith.constant 7 : i32
    %216 = arith.index_cast %c7_i32 : i32 to index
    %c0_48 = arith.constant 0 : index
    %c0_49 = arith.constant 0 : index
    %217 = vector.load %arg2[%216, %c0_48, %c0_49] : memref<8x8x128xf32, #tpu.memory_space<vmem>>, vector<1x8x128xf32>
    %218 = vector.shape_cast %217 : vector<1x8x128xf32> to vector<8x128xf32>
    %cst_50 = arith.constant dense<0.000000e+00> : vector<8x128xf32>
    %219 = tpu.matmul %206, %3, %cst_50 {dimension_numbers = #tpu.dot_dimension_numbers<[1], [0], [0], [1], [0, 0, 1, 1], [], []>} : vector<8x32xf32>, vector<32x128xf32>, vector<8x128xf32> -> vector<8x128xf32>
    %220 = arith.addf %218, %219 : vector<8x128xf32>
    %221 = math.tanh %220 : vector<8x128xf32>
    %222 = vector.broadcast %14 : vector<1x128xf32> to vector<8x128xf32>
    %223 = arith.mulf %221, %222 : vector<8x128xf32>
    %224 = vector.broadcast %17 : vector<1x128xf32> to vector<8x128xf32>
    %225 = arith.addf %223, %224 : vector<8x128xf32>
    %226 = vector.extract_strided_slice %225 {offsets = [0, 0], sizes = [8, 32], strides = [1, 1]} : vector<8x128xf32> to vector<8x32xf32>
    %227 = vector.extract_strided_slice %225 {offsets = [0, 32], sizes = [8, 32], strides = [1, 1]} : vector<8x128xf32> to vector<8x32xf32>
    %228 = vector.extract_strided_slice %225 {offsets = [0, 64], sizes = [8, 32], strides = [1, 1]} : vector<8x128xf32> to vector<8x32xf32>
    %229 = vector.extract_strided_slice %225 {offsets = [0, 96], sizes = [8, 32], strides = [1, 1]} : vector<8x128xf32> to vector<8x32xf32>
    %230 = arith.mulf %227, %204 : vector<8x32xf32>
    %231 = arith.mulf %226, %228 : vector<8x32xf32>
    %232 = arith.addf %230, %231 : vector<8x32xf32>
    %233 = math.tanh %232 : vector<8x32xf32>
    %234 = arith.mulf %229, %233 : vector<8x32xf32>
    %235 = vector.broadcast %4 : vector<1x32xf32> to vector<8x32xf32>
    %236 = arith.mulf %234, %235 : vector<8x32xf32>
    %cst_51 = arith.constant dense<0.000000e+00> : vector<8xf32>
    %237 = vector.multi_reduction <add>, %236, %cst_51 [1] : vector<8x32xf32> to vector<8xf32>
    %238 = vector.broadcast %5 : f32 to vector<8xf32>
    %239 = arith.addf %237, %238 : vector<8xf32>
    %240 = arith.index_cast %c7_i32 : i32 to index
    %c0_52 = arith.constant 0 : index
    %241 = vector.load %arg6[%240, %c0_52] : memref<8x8xf32, #tpu.memory_space<vmem>>, vector<1x8xf32>
    %242 = vector.shape_cast %241 : vector<1x8xf32> to vector<8xf32>
    %243 = vector.shape_cast %239 : vector<8xf32> to vector<1x8xf32>
    tpu.vector_store %arg6[%240, %c0_52], %243 {strides = array<i32>} : memref<8x8xf32, #tpu.memory_space<vmem>>, vector<1x8xf32>,
    %c8_i32 = arith.constant 8 : i32
    %c0_53 = arith.constant 0 : index
    %c0_54 = arith.constant 0 : index
    %244 = vector.load %arg7[%c0_53, %c0_54] : memref<8x32xf32, #tpu.memory_space<vmem>>, vector<8x32xf32>
    tpu.vector_store %arg7[%c0_53, %c0_54], %234 {strides = array<i32>} : memref<8x32xf32, #tpu.memory_space<vmem>>, vector<8x32xf32>,
    %c0_55 = arith.constant 0 : index
    %c0_56 = arith.constant 0 : index
    %245 = vector.load %arg8[%c0_55, %c0_56] : memref<8x32xf32, #tpu.memory_space<vmem>>, vector<8x32xf32>
    tpu.vector_store %arg8[%c0_55, %c0_56], %232 {strides = array<i32>} : memref<8x32xf32, #tpu.memory_space<vmem>>, vector<8x32xf32>,
    return
  }
  func.func @transform_0(%arg0: i32, %arg1: i32) -> (i32, i32, i32) {
    %c0_i32 = arith.constant 0 : i32
    %c0_i32_0 = arith.constant 0 : i32
    return %arg1, %arg0, %c0_i32 : i32, i32, i32
  }
  func.func @transform_1(%arg0: i32, %arg1: i32) -> (i32, i32) {
    %c0_i32 = arith.constant 0 : i32
    %c0_i32_0 = arith.constant 0 : i32
    %c0_i32_1 = arith.constant 0 : i32
    return %c0_i32, %c0_i32_0 : i32, i32
  }
  func.func @transform_2(%arg0: i32, %arg1: i32) -> (i32, i32) {
    %c0_i32 = arith.constant 0 : i32
    %c0_i32_0 = arith.constant 0 : i32
    %c0_i32_1 = arith.constant 0 : i32
    return %c0_i32, %c0_i32_0 : i32, i32
  }
  func.func @transform_3(%arg0: i32, %arg1: i32) -> i32 {
    %c0_i32 = arith.constant 0 : i32
    %c0_i32_0 = arith.constant 0 : i32
    return %c0_i32 : i32
  }
  func.func @transform_4(%arg0: i32, %arg1: i32) -> (i32, i32) {
    %c0_i32 = arith.constant 0 : i32
    return %arg1, %arg0 : i32, i32
  }
}

</mosaic_0001>

<llo_original>
// kernel: simple_lstm_forward.1
$region0: #{simple_lstm_forward.1}
  #allocation0 [shape = 'u32[]', space=smem, size = 0x4, offset = 0x4, fixed_abs, tag = 'smem constant byte address 0x4 - core index']
  #allocation1 [shape = 'u32[144,128]{1,0:T(1,128)}', space=vmem, size = 0x12000, scoped, tag = 'internal scratch']
  #allocation2 [shape = 'f32[8,32]{1,0:T(8,128)}', space=vmem, size = 0x1000, scoped, tag = 'scratch operand']
  #allocation3 [shape = 'f32[8,32]{1,0:T(8,128)}', space=vmem, size = 0x1000, scoped, tag = 'scratch operand']
  #allocation4 [shape = 'f32[1]{0:T(128)S(6)}', space=smem, size = 0x200, scoped, tag = 'scoped memory for simple_lstm_forward.1']
  %s0 = inlined_call_operand.vmem [shape: f32[8,8,128], index: 0, kind: input, shape index: {}]
  %s1 = inlined_call_operand.vmem [shape: f32[32,128], index: 1, kind: input, shape index: {}]
  %s2 = inlined_call_operand.vmem [shape: f32[1,32], index: 2, kind: input, shape index: {}]
  %s3 = inlined_call_operand.<no memory space> [shape: f32[1], index: 3, kind: input, shape index: {}]
  %s4 = inlined_call_operand.vmem [shape: f32[8,8], index: 4, kind: output, shape index: {}]
  %s5 = sld [smem:[#allocation0]]
  $region30: #{simple_lstm_forward.1} parent=0
    _
  %s7 = ssub.s32 1, %s5
  %s8 = scalar_select 0, %s7, %s5
  %9 = sst [smem:[#allocation4]] %s3
  // Predicated region
  $region2: #{simple_lstm_forward.1} parent=0 // pred_check
    _
  $region3: #{simple_lstm_forward.1} parent=0 // pred_check_branch
    %11 = sbr.rel (0) target = $region5
  $region4: #{simple_lstm_forward.1} parent=0 // pred_region
    _
  $region5: #{simple_lstm_forward.1} parent=0 // pred_fallthru
    _
  // Predicated region
  $region6: #{simple_lstm_forward.1} parent=0 // pred_check
    _
  $region7: #{simple_lstm_forward.1} parent=0 // pred_check_branch
    %13 = sbr.rel (0) target = $region9
  $region8: #{simple_lstm_forward.1} parent=0 // pred_region
    _
  $region9: #{simple_lstm_forward.1} parent=0 // pred_fallthru
    _
  // Predicated region
  $region10: #{simple_lstm_forward.1} parent=0 // pred_check
    _
  $region11: #{simple_lstm_forward.1} parent=0 // pred_check_branch
    %15 = sbr.rel (0) target = $region13
  $region12: #{simple_lstm_forward.1} parent=0 // pred_region
    _
  $region13: #{simple_lstm_forward.1} parent=0 // pred_fallthru
    _
  // Predicated region
  $region14: #{simple_lstm_forward.1} parent=0 // pred_check
    _
  $region15: #{simple_lstm_forward.1} parent=0 // pred_check_branch
    %17 = sbr.rel (0) target = $region17
  $region16: #{simple_lstm_forward.1} parent=0 // pred_region
    _
  $region17: #{simple_lstm_forward.1} parent=0 // pred_fallthru
    _
  %p18 = scmp.eq.s32.totalorder 0, 0
  // Predicated region
  $region18: #{simple_lstm_forward.1} parent=0 // pred_check
    %p19 = pneg %p18
  $region19: #{simple_lstm_forward.1} parent=0 // pred_check_branch
    %21 = sbr.rel (%p19) target = $region21
  $region20: #{simple_lstm_forward.1} parent=0 // pred_region
    %vm22 = vcmask 261120
    %23 = vst.msk [vmem:[#allocation2] sm:$0xff] %vm22, 0.0
    %24 = vst.msk [vmem:[#allocation3] sm:$0xff] %vm22, 0.0
  $region21: #{simple_lstm_forward.1} parent=0 // pred_fallthru
    _
  %v25 = vld [vmem:[%s1] sm:$0xff]
  %v26 = vld [vmem:[%s1 + $0x8] sm:$0xff]
  %v27 = vld [vmem:[%s1 + $0x10] sm:$0xff]
  %v28 = vld [vmem:[%s1 + $0x18] sm:$0xff]
  %v29 = vld [vmem:[%s2] sm:$0x1]
  %s30 = sld [smem:[#allocation4]]
  %v31 = vlaneseq
  %v32 = vand.u32 %v31, 127
  %vm33 = vcmp.ge.s32.totalorder %v32, 64
  %vm34 = vcmp.lt.s32.totalorder %v32, 96
  %vm35 = vmand %vm33, %vm34
  %v36 = vsel %vm35, 1.0, 0.5
  %v37 = vsel %vm35, 0.0, 0.5
  %v38 = vld [vmem:[#allocation2] sm:$0xff]
  %v39 = vld [vmem:[#allocation3] sm:$0xff]
  %v40 = vld [vmem:[%s0] sm:$0xff]
  %vm41 = vcmask 261120
  %v43 = vsel %vm41, %v38, 0
  %45 = vmatprep.subr.mxu0 0.0
  %46 = vmatpush1.msra.mxu0 %v25
  %47 = vmatprep.subr.mxu0 0.0
  %48 = vmatpush1.msra.mxu0 %v26
  %49 = vmatprep.subr.mxu0 0.0
  %50 = vmatpush1.msra.mxu0 %v27
  %51 = vmatprep.subr.mxu0 0.0
  %52 = vmatpush1.msra.mxu0 %v28
  %53 = vmatprep.subr.mxu0 0.0
  %54 = vmatpush1.msra.mxu0 0.0
  %55 = vmatprep.subr.mxu0 0.0
  %56 = vmatpush1.msra.mxu0 0.0
  %57 = vmatprep.subr.mxu0 0.0
  %58 = vmatpush1.msra.mxu0 0.0
  %59 = vmatprep.subr.mxu0 0.0
  %60 = vmatpush1.msra.mxu0 0.0
  %61 = vmatprep.subr.mxu0 0.0
  %62 = vmatpush1.msra.mxu0 0.0
  %63 = vmatprep.subr.mxu0 0.0
  %64 = vmatpush1.msra.mxu0 0.0
  %65 = vmatprep.subr.mxu0 0.0
  %66 = vmatpush1.msra.mxu0 0.0
  %67 = vmatprep.subr.mxu0 0.0
  %68 = vmatpush1.msra.mxu0 0.0
  %69 = vmatprep.subr.mxu0 0.0
  %70 = vmatpush1.msra.mxu0 0.0
  %71 = vmatprep.subr.mxu0 0.0
  %72 = vmatpush1.msra.mxu0 0.0
  %73 = vmatprep.subr.mxu0 0.0
  %74 = vmatpush1.msra.mxu0 0.0
  %75 = vmatprep.subr.mxu0 0.0
  %76 = vmatpush1.msra.mxu0 0.0
  %77 = vmatprep.subr.mxu0 0.0
  %78 = vmatpush1.msra.mxu0 0.0
  %79 = vmatprep.subr.mxu0 0.0
  %80 = vmatpush1.msra.mxu0 0.0
  %81 = vmatprep.subr.mxu0 0.0
  %82 = vmatpush1.msra.mxu0 0.0
  %83 = vmatprep.subr.mxu0 0.0
  %84 = vmatpush1.msra.mxu0 0.0
  %85 = vmatprep.subr.mxu0 0.0
  %86 = vmatpush1.msra.mxu0 0.0
  %87 = vmatprep.subr.mxu0 0.0
  %88 = vmatpush1.msra.mxu0 0.0
  %89 = vmatprep.subr.mxu0 0.0
  %90 = vmatpush1.msra.mxu0 0.0
  %91 = vmatprep.subr.mxu0 0.0
  %92 = vmatpush1.msra.mxu0 0.0
  %93 = vmatprep.subr.mxu0 0.0
  %94 = vmatpush1.msra.mxu0 0.0
  %95 = vmatprep.subr.mxu0 0.0
  %96 = vmatpush1.msra.mxu0 0.0
  %97 = vmatprep.subr.mxu0 0.0
  %98 = vmatpush1.msra.mxu0 0.0
  %99 = vmatprep.subr.mxu0 0.0
  %100 = vmatpush1.msra.mxu0 0.0
  %101 = vmatprep.subr.mxu0 0.0
  %102 = vmatpush1.msra.mxu0 0.0
  %103 = vmatprep.subr.mxu0 0.0
  %104 = vmatpush1.msra.mxu0 0.0
  %105 = vmatprep.subr.mxu0 0.0
  %106 = vmatpush1.msra.mxu0 0.0
  %107 = vmatprep.subr.mxu0 0.0
  %108 = vmatpush1.msra.mxu0 0.0
  %109 = vmatprep.mubr.f32.mxu0 0.0
  %110 = vmatmul.mubr.f32.gmra.mrb[0].mxu0 %v43
  %v111 = vpop.f32.mrb[0].mxu0
  %v112 = vadd.f32 0.0, %v111
  %v113 = vpop.f32.mrb[0].mxu0
  %114 = vdwg.mxu0
  %v115 = vadd.f32 %v40, %v112
  %v116 = vtanh.pop %v115
  %v117 = vmul.f32 %v116, %v36
  %v118 = vadd.f32 %v117, %v37
  %120 = vrot.lane.b32.xlu0 %v39, 32
  %v121 = vpop.permute.xlu0 %120
  %v123 = vmul.f32 %v118, %v121
  %125 = vrot.lane.b32.xlu0 %v118, 64
  %v126 = vpop.permute.xlu0 %125
  %v128 = vmul.f32 %v118, %v126
  %130 = vrot.lane.b32.xlu0 %v128, 32
  %v131 = vpop.permute.xlu0 %130
  %v133 = vadd.f32 %v123, %v131
  %v134 = vtanh.pop %v133
  %136 = vrot.lane.b32.xlu0 %v134, 64
  %v137 = vpop.permute.xlu0 %136
  %v139 = vmul.f32 %v118, %v137
  %v141 = vlaneseq
  %v142 = vshrl.u32 %v141, 7
  %v143 = vsub.s32 0, %v142
  %v144 = vrot.slane %v29, %v143
  %145 = vrot.lane.b32.xlu0 %v144, 96
  %v146 = vpop.permute.xlu0 %145
  %v148 = vmul.f32 %v139, %v146
  %150 = vrot.lane.b32.xlu0 %v148, 32
  %v151 = vpop.permute.xlu0 %150
  %v153 = vsel %vm41, %v151, 0.0
  %154 = vadd.xlane.f32.xlu0 %v153
  %v155 = vpop.xlane.xlu0 %154
  %v156 = vstv %s30
  %v157 = vadd.f32 %v155, %v156
  %v159 = vlaneseq
  %v160 = vshrl.u32 %v159, 7
  %v161 = vsub.s32 %v32, %v160
  %v162 = vrot.slane %v157, %v161
  %vm164 = vcmask 57344
  %165 = vst.msk [vmem:[%s4] sm:$0x1] %vm164, %v162
  %s166 = scalar_lea.vmem %s0, 8
  %v167 = vld [vmem:[%s166] sm:$0xff]
  %169 = vrot.lane.b32.xlu0 %v139, 32
  %v170 = vpop.permute.xlu0 %169
  %v171 = vsel %vm41, %v170, 0
  %173 = vmatprep.subr.mxu0 0.0
  %174 = vmatpush1.msra.mxu0 %v25
  %175 = vmatprep.subr.mxu0 0.0
  %176 = vmatpush1.msra.mxu0 %v26
  %177 = vmatprep.subr.mxu0 0.0
  %178 = vmatpush1.msra.mxu0 %v27
  %179 = vmatprep.subr.mxu0 0.0
  %180 = vmatpush1.msra.mxu0 %v28
  %181 = vmatprep.subr.mxu0 0.0
  %182 = vmatpush1.msra.mxu0 0.0
  %183 = vmatprep.subr.mxu0 0.0
  %184 = vmatpush1.msra.mxu0 0.0
  %185 = vmatprep.subr.mxu0 0.0
  %186 = vmatpush1.msra.mxu0 0.0
  %187 = vmatprep.subr.mxu0 0.0
  %188 = vmatpush1.msra.mxu0 0.0
  %189 = vmatprep.subr.mxu0 0.0
  %190 = vmatpush1.msra.mxu0 0.0
  %191 = vmatprep.subr.mxu0 0.0
  %192 = vmatpush1.msra.mxu0 0.0
  %193 = vmatprep.subr.mxu0 0.0
  %194 = vmatpush1.msra.mxu0 0.0
  %195 = vmatprep.subr.mxu0 0.0
  %196 = vmatpush1.msra.mxu0 0.0
  %197 = vmatprep.subr.mxu0 0.0
  %198 = vmatpush1.msra.mxu0 0.0
  %199 = vmatprep.subr.mxu0 0.0
  %200 = vmatpush1.msra.mxu0 0.0
  %201 = vmatprep.subr.mxu0 0.0
  %202 = vmatpush1.msra.mxu0 0.0
  %203 = vmatprep.subr.mxu0 0.0
  %204 = vmatpush1.msra.mxu0 0.0
  %205 = vmatprep.subr.mxu0 0.0
  %206 = vmatpush1.msra.mxu0 0.0
  %207 = vmatprep.subr.mxu0 0.0
  %208 = vmatpush1.msra.mxu0 0.0
  %209 = vmatprep.subr.mxu0 0.0
  %210 = vmatpush1.msra.mxu0 0.0
  %211 = vmatprep.subr.mxu0 0.0
  %212 = vmatpush1.msra.mxu0 0.0
  %213 = vmatprep.subr.mxu0 0.0
  %214 = vmatpush1.msra.mxu0 0.0
  %215 = vmatprep.subr.mxu0 0.0
  %216 = vmatpush1.msra.mxu0 0.0
  %217 = vmatprep.subr.mxu0 0.0
  %218 = vmatpush1.msra.mxu0 0.0
  %219 = vmatprep.subr.mxu0 0.0
  %220 = vmatpush1.msra.mxu0 0.0
  %221 = vmatprep.subr.mxu0 0.0
  %222 = vmatpush1.msra.mxu0 0.0
  %223 = vmatprep.subr.mxu0 0.0
  %224 = vmatpush1.msra.mxu0 0.0
  %225 = vmatprep.subr.mxu0 0.0
  %226 = vmatpush1.msra.mxu0 0.0
  %227 = vmatprep.subr.mxu0 0.0
  %228 = vmatpush1.msra.mxu0 0.0
  %229 = vmatprep.subr.mxu0 0.0
  %230 = vmatpush1.msra.mxu0 0.0
  %231 = vmatprep.subr.mxu0 0.0
  %232 = vmatpush1.msra.mxu0 0.0
  %233 = vmatprep.subr.mxu0 0.0
  %234 = vmatpush1.msra.mxu0 0.0
  %235 = vmatprep.subr.mxu0 0.0
  %236 = vmatpush1.msra.mxu0 0.0
  %237 = vmatprep.mubr.f32.mxu0 0.0
  %238 = vmatmul.mubr.f32.gmra.mrb[0].mxu0 %v171
  %v239 = vpop.f32.mrb[0].mxu0
  %v240 = vadd.f32 0.0, %v239
  %v241 = vpop.f32.mrb[0].mxu0
  %242 = vdwg.mxu0
  %v243 = vadd.f32 %v167, %v240
  %v244 = vtanh.pop %v243
  %v245 = vmul.f32 %v244, %v36
  %v246 = vadd.f32 %v245, %v37
  %v247 = vmul.f32 %v246, %v133
  %249 = vrot.lane.b32.xlu0 %v246, 64
  %v250 = vpop.permute.xlu0 %249
  %v252 = vmul.f32 %v246, %v250
  %254 = vrot.lane.b32.xlu0 %v252, 32
  %v255 = vpop.permute.xlu0 %254
  %v257 = vadd.f32 %v247, %v255
  %v258 = vtanh.pop %v257
  %260 = vrot.lane.b32.xlu0 %v258, 64
  %v261 = vpop.permute.xlu0 %260
  %v263 = vmul.f32 %v246, %v261
  %v264 = vmul.f32 %v263, %v146
  %266 = vrot.lane.b32.xlu0 %v264, 32
  %v267 = vpop.permute.xlu0 %266
  %v269 = vsel %vm41, %v267, 0.0
  %270 = vadd.xlane.f32.xlu0 %v269
  %v271 = vpop.xlane.xlu0 %270
  %v272 = vadd.f32 %v271, %v156
  %v274 = vlaneseq
  %v275 = vshrl.u32 %v274, 7
  %v276 = vsub.s32 %v32, %v275
  %v277 = vrot.slane %v272, %v276
  %279 = vst.msk [vmem:[%s4 + $0x1] sm:$0x1] %vm164, %v277
  %s280 = scalar_lea.vmem %s0, 16
  %v281 = vld [vmem:[%s280] sm:$0xff]
  %283 = vrot.lane.b32.xlu0 %v263, 32
  %v284 = vpop.permute.xlu0 %283
  %v285 = vsel %vm41, %v284, 0
  %287 = vmatprep.subr.mxu0 0.0
  %288 = vmatpush1.msra.mxu0 %v25
  %289 = vmatprep.subr.mxu0 0.0
  %290 = vmatpush1.msra.mxu0 %v26
  %291 = vmatprep.subr.mxu0 0.0
  %292 = vmatpush1.msra.mxu0 %v27
  %293 = vmatprep.subr.mxu0 0.0
  %294 = vmatpush1.msra.mxu0 %v28
  %295 = vmatprep.subr.mxu0 0.0
  %296 = vmatpush1.msra.mxu0 0.0
  %297 = vmatprep.subr.mxu0 0.0
  %298 = vmatpush1.msra.mxu0 0.0
  %299 = vmatprep.subr.mxu0 0.0
  %300 = vmatpush1.msra.mxu0 0.0
  %301 = vmatprep.subr.mxu0 0.0
  %302 = vmatpush1.msra.mxu0 0.0
  %303 = vmatprep.subr.mxu0 0.0
  %304 = vmatpush1.msra.mxu0 0.0
  %305 = vmatprep.subr.mxu0 0.0
  %306 = vmatpush1.msra.mxu0 0.0
  %307 = vmatprep.subr.mxu0 0.0
  %308 = vmatpush1.msra.mxu0 0.0
  %309 = vmatprep.subr.mxu0 0.0
  %310 = vmatpush1.msra.mxu0 0.0
  %311 = vmatprep.subr.mxu0 0.0
  %312 = vmatpush1.msra.mxu0 0.0
  %313 = vmatprep.subr.mxu0 0.0
  %314 = vmatpush1.msra.mxu0 0.0
  %315 = vmatprep.subr.mxu0 0.0
  %316 = vmatpush1.msra.mxu0 0.0
  %317 = vmatprep.subr.mxu0 0.0
  %318 = vmatpush1.msra.mxu0 0.0
  %319 = vmatprep.subr.mxu0 0.0
  %320 = vmatpush1.msra.mxu0 0.0
  %321 = vmatprep.subr.mxu0 0.0
  %322 = vmatpush1.msra.mxu0 0.0
  %323 = vmatprep.subr.mxu0 0.0
  %324 = vmatpush1.msra.mxu0 0.0
  %325 = vmatprep.subr.mxu0 0.0
  %326 = vmatpush1.msra.mxu0 0.0
  %327 = vmatprep.subr.mxu0 0.0
  %328 = vmatpush1.msra.mxu0 0.0
  %329 = vmatprep.subr.mxu0 0.0
  %330 = vmatpush1.msra.mxu0 0.0
  %331 = vmatprep.subr.mxu0 0.0
  %332 = vmatpush1.msra.mxu0 0.0
  %333 = vmatprep.subr.mxu0 0.0
  %334 = vmatpush1.msra.mxu0 0.0
  %335 = vmatprep.subr.mxu0 0.0
  %336 = vmatpush1.msra.mxu0 0.0
  %337 = vmatprep.subr.mxu0 0.0
  %338 = vmatpush1.msra.mxu0 0.0
  %339 = vmatprep.subr.mxu0 0.0
  %340 = vmatpush1.msra.mxu0 0.0
  %341 = vmatprep.subr.mxu0 0.0
  %342 = vmatpush1.msra.mxu0 0.0
  %343 = vmatprep.subr.mxu0 0.0
  %344 = vmatpush1.msra.mxu0 0.0
  %345 = vmatprep.subr.mxu0 0.0
  %346 = vmatpush1.msra.mxu0 0.0
  %347 = vmatprep.subr.mxu0 0.0
  %348 = vmatpush1.msra.mxu0 0.0
  %349 = vmatprep.subr.mxu0 0.0
  %350 = vmatpush1.msra.mxu0 0.0
  %351 = vmatprep.mubr.f32.mxu0 0.0
  %352 = vmatmul.mubr.f32.gmra.mrb[0].mxu0 %v285
  %v353 = vpop.f32.mrb[0].mxu0
  %v354 = vadd.f32 0.0, %v353
  %v355 = vpop.f32.mrb[0].mxu0
  %356 = vdwg.mxu0
  %v357 = vadd.f32 %v281, %v354
  %v358 = vtanh.pop %v357
  %v359 = vmul.f32 %v358, %v36
  %v360 = vadd.f32 %v359, %v37
  %v361 = vmul.f32 %v360, %v257
  %363 = vrot.lane.b32.xlu0 %v360, 64
  %v364 = vpop.permute.xlu0 %363
  %v366 = vmul.f32 %v360, %v364
  %368 = vrot.lane.b32.xlu0 %v366, 32
  %v369 = vpop.permute.xlu0 %368
  %v371 = vadd.f32 %v361, %v369
  %v372 = vtanh.pop %v371
  %374 = vrot.lane.b32.xlu0 %v372, 64
  %v375 = vpop.permute.xlu0 %374
  %v377 = vmul.f32 %v360, %v375
  %v378 = vmul.f32 %v377, %v146
  %380 = vrot.lane.b32.xlu0 %v378, 32
  %v381 = vpop.permute.xlu0 %380
  %v383 = vsel %vm41, %v381, 0.0
  %384 = vadd.xlane.f32.xlu0 %v383
  %v385 = vpop.xlane.xlu0 %384
  %v386 = vadd.f32 %v385, %v156
  %v388 = vlaneseq
  %v389 = vshrl.u32 %v388, 7
  %v390 = vsub.s32 %v32, %v389
  %v391 = vrot.slane %v386, %v390
  %393 = vst.msk [vmem:[%s4 + $0x2] sm:$0x1] %vm164, %v391
  %s394 = scalar_lea.vmem %s0, 24
  %v395 = vld [vmem:[%s394] sm:$0xff]
  %397 = vrot.lane.b32.xlu0 %v377, 32
  %v398 = vpop.permute.xlu0 %397
  %v399 = vsel %vm41, %v398, 0
  %401 = vmatprep.subr.mxu0 0.0
  %402 = vmatpush1.msra.mxu0 %v25
  %403 = vmatprep.subr.mxu0 0.0
  %404 = vmatpush1.msra.mxu0 %v26
  %405 = vmatprep.subr.mxu0 0.0
  %406 = vmatpush1.msra.mxu0 %v27
  %407 = vmatprep.subr.mxu0 0.0
  %408 = vmatpush1.msra.mxu0 %v28
  %409 = vmatprep.subr.mxu0 0.0
  %410 = vmatpush1.msra.mxu0 0.0
  %411 = vmatprep.subr.mxu0 0.0
  %412 = vmatpush1.msra.mxu0 0.0
  %413 = vmatprep.subr.mxu0 0.0
  %414 = vmatpush1.msra.mxu0 0.0
  %415 = vmatprep.subr.mxu0 0.0
  %416 = vmatpush1.msra.mxu0 0.0
  %417 = vmatprep.subr.mxu0 0.0
  %418 = vmatpush1.msra.mxu0 0.0
  %419 = vmatprep.subr.mxu0 0.0
  %420 = vmatpush1.msra.mxu0 0.0
  %421 = vmatprep.subr.mxu0 0.0
  %422 = vmatpush1.msra.mxu0 0.0
  %423 = vmatprep.subr.mxu0 0.0
  %424 = vmatpush1.msra.mxu0 0.0
  %425 = vmatprep.subr.mxu0 0.0
  %426 = vmatpush1.msra.mxu0 0.0
  %427 = vmatprep.subr.mxu0 0.0
  %428 = vmatpush1.msra.mxu0 0.0
  %429 = vmatprep.subr.mxu0 0.0
  %430 = vmatpush1.msra.mxu0 0.0
  %431 = vmatprep.subr.mxu0 0.0
  %432 = vmatpush1.msra.mxu0 0.0
  %433 = vmatprep.subr.mxu0 0.0
  %434 = vmatpush1.msra.mxu0 0.0
  %435 = vmatprep.subr.mxu0 0.0
  %436 = vmatpush1.msra.mxu0 0.0
  %437 = vmatprep.subr.mxu0 0.0
  %438 = vmatpush1.msra.mxu0 0.0
  %439 = vmatprep.subr.mxu0 0.0
  %440 = vmatpush1.msra.mxu0 0.0
  %441 = vmatprep.subr.mxu0 0.0
  %442 = vmatpush1.msra.mxu0 0.0
  %443 = vmatprep.subr.mxu0 0.0
  %444 = vmatpush1.msra.mxu0 0.0
  %445 = vmatprep.subr.mxu0 0.0
  %446 = vmatpush1.msra.mxu0 0.0
  %447 = vmatprep.subr.mxu0 0.0
  %448 = vmatpush1.msra.mxu0 0.0
  %449 = vmatprep.subr.mxu0 0.0
  %450 = vmatpush1.msra.mxu0 0.0
  %451 = vmatprep.subr.mxu0 0.0
  %452 = vmatpush1.msra.mxu0 0.0
  %453 = vmatprep.subr.mxu0 0.0
  %454 = vmatpush1.msra.mxu0 0.0
  %455 = vmatprep.subr.mxu0 0.0
  %456 = vmatpush1.msra.mxu0 0.0
  %457 = vmatprep.subr.mxu0 0.0
  %458 = vmatpush1.msra.mxu0 0.0
  %459 = vmatprep.subr.mxu0 0.0
  %460 = vmatpush1.msra.mxu0 0.0
  %461 = vmatprep.subr.mxu0 0.0
  %462 = vmatpush1.msra.mxu0 0.0
  %463 = vmatprep.subr.mxu0 0.0
  %464 = vmatpush1.msra.mxu0 0.0
  %465 = vmatprep.mubr.f32.mxu0 0.0
  %466 = vmatmul.mubr.f32.gmra.mrb[0].mxu0 %v399
  %v467 = vpop.f32.mrb[0].mxu0
  %v468 = vadd.f32 0.0, %v467
  %v469 = vpop.f32.mrb[0].mxu0
  %470 = vdwg.mxu0
  %v471 = vadd.f32 %v395, %v468
  %v472 = vtanh.pop %v471
  %v473 = vmul.f32 %v472, %v36
  %v474 = vadd.f32 %v473, %v37
  %v475 = vmul.f32 %v474, %v371
  %477 = vrot.lane.b32.xlu0 %v474, 64
  %v478 = vpop.permute.xlu0 %477
  %v480 = vmul.f32 %v474, %v478
  %482 = vrot.lane.b32.xlu0 %v480, 32
  %v483 = vpop.permute.xlu0 %482
  %v485 = vadd.f32 %v475, %v483
  %v486 = vtanh.pop %v485
  %488 = vrot.lane.b32.xlu0 %v486, 64
  %v489 = vpop.permute.xlu0 %488
  %v491 = vmul.f32 %v474, %v489
  %v492 = vmul.f32 %v491, %v146
  %494 = vrot.lane.b32.xlu0 %v492, 32
  %v495 = vpop.permute.xlu0 %494
  %v497 = vsel %vm41, %v495, 0.0
  %498 = vadd.xlane.f32.xlu0 %v497
  %v499 = vpop.xlane.xlu0 %498
  %v500 = vadd.f32 %v499, %v156
  %v502 = vlaneseq
  %v503 = vshrl.u32 %v502, 7
  %v504 = vsub.s32 %v32, %v503
  %v505 = vrot.slane %v500, %v504
  %507 = vst.msk [vmem:[%s4 + $0x3] sm:$0x1] %vm164, %v505
  %s508 = scalar_lea.vmem %s0, 32
  %v509 = vld [vmem:[%s508] sm:$0xff]
  %511 = vrot.lane.b32.xlu0 %v491, 32
  %v512 = vpop.permute.xlu0 %511
  %v513 = vsel %vm41, %v512, 0
  %515 = vmatprep.subr.mxu0 0.0
  %516 = vmatpush1.msra.mxu0 %v25
  %517 = vmatprep.subr.mxu0 0.0
  %518 = vmatpush1.msra.mxu0 %v26
  %519 = vmatprep.subr.mxu0 0.0
  %520 = vmatpush1.msra.mxu0 %v27
  %521 = vmatprep.subr.mxu0 0.0
  %522 = vmatpush1.msra.mxu0 %v28
  %523 = vmatprep.subr.mxu0 0.0
  %524 = vmatpush1.msra.mxu0 0.0
  %525 = vmatprep.subr.mxu0 0.0
  %526 = vmatpush1.msra.mxu0 0.0
  %527 = vmatprep.subr.mxu0 0.0
  %528 = vmatpush1.msra.mxu0 0.0
  %529 = vmatprep.subr.mxu0 0.0
  %530 = vmatpush1.msra.mxu0 0.0
  %531 = vmatprep.subr.mxu0 0.0
  %532 = vmatpush1.msra.mxu0 0.0
  %533 = vmatprep.subr.mxu0 0.0
  %534 = vmatpush1.msra.mxu0 0.0
  %535 = vmatprep.subr.mxu0 0.0
  %536 = vmatpush1.msra.mxu0 0.0
  %537 = vmatprep.subr.mxu0 0.0
  %538 = vmatpush1.msra.mxu0 0.0
  %539 = vmatprep.subr.mxu0 0.0
  %540 = vmatpush1.msra.mxu0 0.0
  %541 = vmatprep.subr.mxu0 0.0
  %542 = vmatpush1.msra.mxu0 0.0
  %543 = vmatprep.subr.mxu0 0.0
  %544 = vmatpush1.msra.mxu0 0.0
  %545 = vmatprep.subr.mxu0 0.0
  %546 = vmatpush1.msra.mxu0 0.0
  %547 = vmatprep.subr.mxu0 0.0
  %548 = vmatpush1.msra.mxu0 0.0
  %549 = vmatprep.subr.mxu0 0.0
  %550 = vmatpush1.msra.mxu0 0.0
  %551 = vmatprep.subr.mxu0 0.0
  %552 = vmatpush1.msra.mxu0 0.0
  %553 = vmatprep.subr.mxu0 0.0
  %554 = vmatpush1.msra.mxu0 0.0
  %555 = vmatprep.subr.mxu0 0.0
  %556 = vmatpush1.msra.mxu0 0.0
  %557 = vmatprep.subr.mxu0 0.0
  %558 = vmatpush1.msra.mxu0 0.0
  %559 = vmatprep.subr.mxu0 0.0
  %560 = vmatpush1.msra.mxu0 0.0
  %561 = vmatprep.subr.mxu0 0.0
  %562 = vmatpush1.msra.mxu0 0.0
  %563 = vmatprep.subr.mxu0 0.0
  %564 = vmatpush1.msra.mxu0 0.0
  %565 = vmatprep.subr.mxu0 0.0
  %566 = vmatpush1.msra.mxu0 0.0
  %567 = vmatprep.subr.mxu0 0.0
  %568 = vmatpush1.msra.mxu0 0.0
  %569 = vmatprep.subr.mxu0 0.0
  %570 = vmatpush1.msra.mxu0 0.0
  %571 = vmatprep.subr.mxu0 0.0
  %572 = vmatpush1.msra.mxu0 0.0
  %573 = vmatprep.subr.mxu0 0.0
  %574 = vmatpush1.msra.mxu0 0.0
  %575 = vmatprep.subr.mxu0 0.0
  %576 = vmatpush1.msra.mxu0 0.0
  %577 = vmatprep.subr.mxu0 0.0
  %578 = vmatpush1.msra.mxu0 0.0
  %579 = vmatprep.mubr.f32.mxu0 0.0
  %580 = vmatmul.mubr.f32.gmra.mrb[0].mxu0 %v513
  %v581 = vpop.f32.mrb[0].mxu0
  %v582 = vadd.f32 0.0, %v581
  %v583 = vpop.f32.mrb[0].mxu0
  %584 = vdwg.mxu0
  %v585 = vadd.f32 %v509, %v582
  %v586 = vtanh.pop %v585
  %v587 = vmul.f32 %v586, %v36
  %v588 = vadd.f32 %v587, %v37
  %v589 = vmul.f32 %v588, %v485
  %591 = vrot.lane.b32.xlu0 %v588, 64
  %v592 = vpop.permute.xlu0 %591
  %v594 = vmul.f32 %v588, %v592
  %596 = vrot.lane.b32.xlu0 %v594, 32
  %v597 = vpop.permute.xlu0 %596
  %v599 = vadd.f32 %v589, %v597
  %v600 = vtanh.pop %v599
  %602 = vrot.lane.b32.xlu0 %v600, 64
  %v603 = vpop.permute.xlu0 %602
  %v605 = vmul.f32 %v588, %v603
  %v606 = vmul.f32 %v605, %v146
  %608 = vrot.lane.b32.xlu0 %v606, 32
  %v609 = vpop.permute.xlu0 %608
  %v611 = vsel %vm41, %v609, 0.0
  %612 = vadd.xlane.f32.xlu0 %v611
  %v613 = vpop.xlane.xlu0 %612
  %v614 = vadd.f32 %v613, %v156
  %v616 = vlaneseq
  %v617 = vshrl.u32 %v616, 7
  %v618 = vsub.s32 %v32, %v617
  %v619 = vrot.slane %v614, %v618
  %621 = vst.msk [vmem:[%s4 + $0x4] sm:$0x1] %vm164, %v619
  %s622 = scalar_lea.vmem %s0, 40
  %v623 = vld [vmem:[%s622] sm:$0xff]
  %625 = vrot.lane.b32.xlu0 %v605, 32
  %v626 = vpop.permute.xlu0 %625
  %v627 = vsel %vm41, %v626, 0
  %629 = vmatprep.subr.mxu0 0.0
  %630 = vmatpush1.msra.mxu0 %v25
  %631 = vmatprep.subr.mxu0 0.0
  %632 = vmatpush1.msra.mxu0 %v26
  %633 = vmatprep.subr.mxu0 0.0
  %634 = vmatpush1.msra.mxu0 %v27
  %635 = vmatprep.subr.mxu0 0.0
  %636 = vmatpush1.msra.mxu0 %v28
  %637 = vmatprep.subr.mxu0 0.0
  %638 = vmatpush1.msra.mxu0 0.0
  %639 = vmatprep.subr.mxu0 0.0
  %640 = vmatpush1.msra.mxu0 0.0
  %641 = vmatprep.subr.mxu0 0.0
  %642 = vmatpush1.msra.mxu0 0.0
  %643 = vmatprep.subr.mxu0 0.0
  %644 = vmatpush1.msra.mxu0 0.0
  %645 = vmatprep.subr.mxu0 0.0
  %646 = vmatpush1.msra.mxu0 0.0
  %647 = vmatprep.subr.mxu0 0.0
  %648 = vmatpush1.msra.mxu0 0.0
  %649 = vmatprep.subr.mxu0 0.0
  %650 = vmatpush1.msra.mxu0 0.0
  %651 = vmatprep.subr.mxu0 0.0
  %652 = vmatpush1.msra.mxu0 0.0
  %653 = vmatprep.subr.mxu0 0.0
  %654 = vmatpush1.msra.mxu0 0.0
  %655 = vmatprep.subr.mxu0 0.0
  %656 = vmatpush1.msra.mxu0 0.0
  %657 = vmatprep.subr.mxu0 0.0
  %658 = vmatpush1.msra.mxu0 0.0
  %659 = vmatprep.subr.mxu0 0.0
  %660 = vmatpush1.msra.mxu0 0.0
  %661 = vmatprep.subr.mxu0 0.0
  %662 = vmatpush1.msra.mxu0 0.0
  %663 = vmatprep.subr.mxu0 0.0
  %664 = vmatpush1.msra.mxu0 0.0
  %665 = vmatprep.subr.mxu0 0.0
  %666 = vmatpush1.msra.mxu0 0.0
  %667 = vmatprep.subr.mxu0 0.0
  %668 = vmatpush1.msra.mxu0 0.0
  %669 = vmatprep.subr.mxu0 0.0
  %670 = vmatpush1.msra.mxu0 0.0
  %671 = vmatprep.subr.mxu0 0.0
  %672 = vmatpush1.msra.mxu0 0.0
  %673 = vmatprep.subr.mxu0 0.0
  %674 = vmatpush1.msra.mxu0 0.0
  %675 = vmatprep.subr.mxu0 0.0
  %676 = vmatpush1.msra.mxu0 0.0
  %677 = vmatprep.subr.mxu0 0.0
  %678 = vmatpush1.msra.mxu0 0.0
  %679 = vmatprep.subr.mxu0 0.0
  %680 = vmatpush1.msra.mxu0 0.0
  %681 = vmatprep.subr.mxu0 0.0
  %682 = vmatpush1.msra.mxu0 0.0
  %683 = vmatprep.subr.mxu0 0.0
  %684 = vmatpush1.msra.mxu0 0.0
  %685 = vmatprep.subr.mxu0 0.0
  %686 = vmatpush1.msra.mxu0 0.0
  %687 = vmatprep.subr.mxu0 0.0
  %688 = vmatpush1.msra.mxu0 0.0
  %689 = vmatprep.subr.mxu0 0.0
  %690 = vmatpush1.msra.mxu0 0.0
  %691 = vmatprep.subr.mxu0 0.0
  %692 = vmatpush1.msra.mxu0 0.0
  %693 = vmatprep.mubr.f32.mxu0 0.0
  %694 = vmatmul.mubr.f32.gmra.mrb[0].mxu0 %v627
  %v695 = vpop.f32.mrb[0].mxu0
  %v696 = vadd.f32 0.0, %v695
  %v697 = vpop.f32.mrb[0].mxu0
  %698 = vdwg.mxu0
  %v699 = vadd.f32 %v623, %v696
  %v700 = vtanh.pop %v699
  %v701 = vmul.f32 %v700, %v36
  %v702 = vadd.f32 %v701, %v37
  %v703 = vmul.f32 %v702, %v599
  %705 = vrot.lane.b32.xlu0 %v702, 64
  %v706 = vpop.permute.xlu0 %705
  %v708 = vmul.f32 %v702, %v706
  %710 = vrot.lane.b32.xlu0 %v708, 32
  %v711 = vpop.permute.xlu0 %710
  %v713 = vadd.f32 %v703, %v711
  %v714 = vtanh.pop %v713
  %716 = vrot.lane.b32.xlu0 %v714, 64
  %v717 = vpop.permute.xlu0 %716
  %v719 = vmul.f32 %v702, %v717
  %v720 = vmul.f32 %v719, %v146
  %722 = vrot.lane.b32.xlu0 %v720, 32
  %v723 = vpop.permute.xlu0 %722
  %v725 = vsel %vm41, %v723, 0.0
  %726 = vadd.xlane.f32.xlu0 %v725
  %v727 = vpop.xlane.xlu0 %726
  %v728 = vadd.f32 %v727, %v156
  %v730 = vlaneseq
  %v731 = vshrl.u32 %v730, 7
  %v732 = vsub.s32 %v32, %v731
  %v733 = vrot.slane %v728, %v732
  %735 = vst.msk [vmem:[%s4 + $0x5] sm:$0x1] %vm164, %v733
  %s736 = scalar_lea.vmem %s0, 48
  %v737 = vld [vmem:[%s736] sm:$0xff]
  %739 = vrot.lane.b32.xlu0 %v719, 32
  %v740 = vpop.permute.xlu0 %739
  %v741 = vsel %vm41, %v740, 0
  %743 = vmatprep.subr.mxu0 0.0
  %744 = vmatpush1.msra.mxu0 %v25
  %745 = vmatprep.subr.mxu0 0.0
  %746 = vmatpush1.msra.mxu0 %v26
  %747 = vmatprep.subr.mxu0 0.0
  %748 = vmatpush1.msra.mxu0 %v27
  %749 = vmatprep.subr.mxu0 0.0
  %750 = vmatpush1.msra.mxu0 %v28
  %751 = vmatprep.subr.mxu0 0.0
  %752 = vmatpush1.msra.mxu0 0.0
  %753 = vmatprep.subr.mxu0 0.0
  %754 = vmatpush1.msra.mxu0 0.0
  %755 = vmatprep.subr.mxu0 0.0
  %756 = vmatpush1.msra.mxu0 0.0
  %757 = vmatprep.subr.mxu0 0.0
  %758 = vmatpush1.msra.mxu0 0.0
  %759 = vmatprep.subr.mxu0 0.0
  %760 = vmatpush1.msra.mxu0 0.0
  %761 = vmatprep.subr.mxu0 0.0
  %762 = vmatpush1.msra.mxu0 0.0
  %763 = vmatprep.subr.mxu0 0.0
  %764 = vmatpush1.msra.mxu0 0.0
  %765 = vmatprep.subr.mxu0 0.0
  %766 = vmatpush1.msra.mxu0 0.0
  %767 = vmatprep.subr.mxu0 0.0
  %768 = vmatpush1.msra.mxu0 0.0
  %769 = vmatprep.subr.mxu0 0.0
  %770 = vmatpush1.msra.mxu0 0.0
  %771 = vmatprep.subr.mxu0 0.0
  %772 = vmatpush1.msra.mxu0 0.0
  %773 = vmatprep.subr.mxu0 0.0
  %774 = vmatpush1.msra.mxu0 0.0
  %775 = vmatprep.subr.mxu0 0.0
  %776 = vmatpush1.msra.mxu0 0.0
  %777 = vmatprep.subr.mxu0 0.0
  %778 = vmatpush1.msra.mxu0 0.0
  %779 = vmatprep.subr.mxu0 0.0
  %780 = vmatpush1.msra.mxu0 0.0
  %781 = vmatprep.subr.mxu0 0.0
  %782 = vmatpush1.msra.mxu0 0.0
  %783 = vmatprep.subr.mxu0 0.0
  %784 = vmatpush1.msra.mxu0 0.0
  %785 = vmatprep.subr.mxu0 0.0
  %786 = vmatpush1.msra.mxu0 0.0
  %787 = vmatprep.subr.mxu0 0.0
  %788 = vmatpush1.msra.mxu0 0.0
  %789 = vmatprep.subr.mxu0 0.0
  %790 = vmatpush1.msra.mxu0 0.0
  %791 = vmatprep.subr.mxu0 0.0
  %792 = vmatpush1.msra.mxu0 0.0
  %793 = vmatprep.subr.mxu0 0.0
  %794 = vmatpush1.msra.mxu0 0.0
  %795 = vmatprep.subr.mxu0 0.0
  %796 = vmatpush1.msra.mxu0 0.0
  %797 = vmatprep.subr.mxu0 0.0
  %798 = vmatpush1.msra.mxu0 0.0
  %799 = vmatprep.subr.mxu0 0.0
  %800 = vmatpush1.msra.mxu0 0.0
  %801 = vmatprep.subr.mxu0 0.0
  %802 = vmatpush1.msra.mxu0 0.0
  %803 = vmatprep.subr.mxu0 0.0
  %804 = vmatpush1.msra.mxu0 0.0
  %805 = vmatprep.subr.mxu0 0.0
  %806 = vmatpush1.msra.mxu0 0.0
  %807 = vmatprep.mubr.f32.mxu0 0.0
  %808 = vmatmul.mubr.f32.gmra.mrb[0].mxu0 %v741
  %v809 = vpop.f32.mrb[0].mxu0
  %v810 = vadd.f32 0.0, %v809
  %v811 = vpop.f32.mrb[0].mxu0
  %812 = vdwg.mxu0
  %v813 = vadd.f32 %v737, %v810
  %v814 = vtanh.pop %v813
  %v815 = vmul.f32 %v814, %v36
  %v816 = vadd.f32 %v815, %v37
  %v817 = vmul.f32 %v816, %v713
  %819 = vrot.lane.b32.xlu0 %v816, 64
  %v820 = vpop.permute.xlu0 %819
  %v822 = vmul.f32 %v816, %v820
  %824 = vrot.lane.b32.xlu0 %v822, 32
  %v825 = vpop.permute.xlu0 %824
  %v827 = vadd.f32 %v817, %v825
  %v828 = vtanh.pop %v827
  %830 = vrot.lane.b32.xlu0 %v828, 64
  %v831 = vpop.permute.xlu0 %830
  %v833 = vmul.f32 %v816, %v831
  %v834 = vmul.f32 %v833, %v146
  %836 = vrot.lane.b32.xlu0 %v834, 32
  %v837 = vpop.permute.xlu0 %836
  %v839 = vsel %vm41, %v837, 0.0
  %840 = vadd.xlane.f32.xlu0 %v839
  %v841 = vpop.xlane.xlu0 %840
  %v842 = vadd.f32 %v841, %v156
  %v844 = vlaneseq
  %v845 = vshrl.u32 %v844, 7
  %v846 = vsub.s32 %v32, %v845
  %v847 = vrot.slane %v842, %v846
  %849 = vst.msk [vmem:[%s4 + $0x6] sm:$0x1] %vm164, %v847
  %s850 = scalar_lea.vmem %s0, 56
  %v851 = vld [vmem:[%s850] sm:$0xff]
  %853 = vrot.lane.b32.xlu0 %v833, 32
  %v854 = vpop.permute.xlu0 %853
  %v855 = vsel %vm41, %v854, 0
  %857 = vmatprep.subr.mxu0 0.0
  %858 = vmatpush1.msra.mxu0 %v25
  %859 = vmatprep.subr.mxu0 0.0
  %860 = vmatpush1.msra.mxu0 %v26
  %861 = vmatprep.subr.mxu0 0.0
  %862 = vmatpush1.msra.mxu0 %v27
  %863 = vmatprep.subr.mxu0 0.0
  %864 = vmatpush1.msra.mxu0 %v28
  %865 = vmatprep.subr.mxu0 0.0
  %866 = vmatpush1.msra.mxu0 0.0
  %867 = vmatprep.subr.mxu0 0.0
  %868 = vmatpush1.msra.mxu0 0.0
  %869 = vmatprep.subr.mxu0 0.0
  %870 = vmatpush1.msra.mxu0 0.0
  %871 = vmatprep.subr.mxu0 0.0
  %872 = vmatpush1.msra.mxu0 0.0
  %873 = vmatprep.subr.mxu0 0.0
  %874 = vmatpush1.msra.mxu0 0.0
  %875 = vmatprep.subr.mxu0 0.0
  %876 = vmatpush1.msra.mxu0 0.0
  %877 = vmatprep.subr.mxu0 0.0
  %878 = vmatpush1.msra.mxu0 0.0
  %879 = vmatprep.subr.mxu0 0.0
  %880 = vmatpush1.msra.mxu0 0.0
  %881 = vmatprep.subr.mxu0 0.0
  %882 = vmatpush1.msra.mxu0 0.0
  %883 = vmatprep.subr.mxu0 0.0
  %884 = vmatpush1.msra.mxu0 0.0
  %885 = vmatprep.subr.mxu0 0.0
  %886 = vmatpush1.msra.mxu0 0.0
  %887 = vmatprep.subr.mxu0 0.0
  %888 = vmatpush1.msra.mxu0 0.0
  %889 = vmatprep.subr.mxu0 0.0
  %890 = vmatpush1.msra.mxu0 0.0
  %891 = vmatprep.subr.mxu0 0.0
  %892 = vmatpush1.msra.mxu0 0.0
  %893 = vmatprep.subr.mxu0 0.0
  %894 = vmatpush1.msra.mxu0 0.0
  %895 = vmatprep.subr.mxu0 0.0
  %896 = vmatpush1.msra.mxu0 0.0
  %897 = vmatprep.subr.mxu0 0.0
  %898 = vmatpush1.msra.mxu0 0.0
  %899 = vmatprep.subr.mxu0 0.0
  %900 = vmatpush1.msra.mxu0 0.0
  %901 = vmatprep.subr.mxu0 0.0
  %902 = vmatpush1.msra.mxu0 0.0
  %903 = vmatprep.subr.mxu0 0.0
  %904 = vmatpush1.msra.mxu0 0.0
  %905 = vmatprep.subr.mxu0 0.0
  %906 = vmatpush1.msra.mxu0 0.0
  %907 = vmatprep.subr.mxu0 0.0
  %908 = vmatpush1.msra.mxu0 0.0
  %909 = vmatprep.subr.mxu0 0.0
  %910 = vmatpush1.msra.mxu0 0.0
  %911 = vmatprep.subr.mxu0 0.0
  %912 = vmatpush1.msra.mxu0 0.0
  %913 = vmatprep.subr.mxu0 0.0
  %914 = vmatpush1.msra.mxu0 0.0
  %915 = vmatprep.subr.mxu0 0.0
  %916 = vmatpush1.msra.mxu0 0.0
  %917 = vmatprep.subr.mxu0 0.0
  %918 = vmatpush1.msra.mxu0 0.0
  %919 = vmatprep.subr.mxu0 0.0
  %920 = vmatpush1.msra.mxu0 0.0
  %921 = vmatprep.mubr.f32.mxu0 0.0
  %922 = vmatmul.mubr.f32.gmra.mrb[0].mxu0 %v855
  %v923 = vpop.f32.mrb[0].mxu0
  %v924 = vadd.f32 0.0, %v923
  %v925 = vpop.f32.mrb[0].mxu0
  %926 = vdwg.mxu0
  %v927 = vadd.f32 %v851, %v924
  %v928 = vtanh.pop %v927
  %v929 = vmul.f32 %v928, %v36
  %v930 = vadd.f32 %v929, %v37
  %v931 = vmul.f32 %v930, %v827
  %933 = vrot.lane.b32.xlu0 %v930, 64
  %v934 = vpop.permute.xlu0 %933
  %v936 = vmul.f32 %v930, %v934
  %938 = vrot.lane.b32.xlu0 %v936, 32
  %v939 = vpop.permute.xlu0 %938
  %v941 = vadd.f32 %v931, %v939
  %v942 = vtanh.pop %v941
  %944 = vrot.lane.b32.xlu0 %v942, 64
  %v945 = vpop.permute.xlu0 %944
  %v947 = vmul.f32 %v930, %v945
  %v948 = vmul.f32 %v947, %v146
  %950 = vrot.lane.b32.xlu0 %v948, 32
  %v951 = vpop.permute.xlu0 %950
  %v953 = vsel %vm41, %v951, 0.0
  %954 = vadd.xlane.f32.xlu0 %v953
  %v955 = vpop.xlane.xlu0 %954
  %v956 = vadd.f32 %v955, %v156
  %v958 = vlaneseq
  %v959 = vshrl.u32 %v958, 7
  %v960 = vsub.s32 %v32, %v959
  %v961 = vrot.slane %v956, %v960
  %963 = vst.msk [vmem:[%s4 + $0x7] sm:$0x1] %vm164, %v961
  %965 = vrot.lane.b32.xlu0 %v947, 32
  %v966 = vpop.permute.xlu0 %965
  %968 = vst.msk [vmem:[#allocation2] sm:$0xff] %vm41, %v966
  %970 = vrot.lane.b32.xlu0 %v941, 96
  %v971 = vpop.permute.xlu0 %970
  %973 = vst.msk [vmem:[#allocation3] sm:$0xff] %vm41, %v971
  // Predicated region
  $region22: #{simple_lstm_forward.1} parent=0 // pred_check
    _
  $region23: #{simple_lstm_forward.1} parent=0 // pred_check_branch
    %975 = sbr.rel (0) target = $region25
  $region24: #{simple_lstm_forward.1} parent=0 // pred_region
    _
  $region25: #{simple_lstm_forward.1} parent=0 // pred_fallthru
    _
  // Predicated region
  $region26: #{simple_lstm_forward.1} parent=0 // pred_check
    _
  $region27: #{simple_lstm_forward.1} parent=0 // pred_check_branch
    %977 = sbr.rel (0) target = $region29
  $region28: #{simple_lstm_forward.1} parent=0 // pred_region
    _
  $region29: #{simple_lstm_forward.1} parent=0 // pred_fallthru
    _

</llo_original>
